<compile_context>
chip_gen: v7x
topology: tpu7x:2x2x1
jax: 0.10.0
libtpu: 0.0.40
codegen_flags: <defaults>
</compile_context>

<pallas_src>
import jax
import jax.numpy as jnp
from jax.experimental import pallas as pl
from jax.experimental.pallas import tpu as pltpu


def _local_kernel(x_ref, w1t_ref, b1_ref, w2_ref, b2_ref, o_ref):
    # x_ref  : (1, C, HW)   one batch element; channels on sublanes, spatial on lanes
    # w1t_ref: (C, hidden)  conv1 weight transposed (PyTorch weight is (hidden, C, 1, 1))
    # b1_ref : (1, hidden)
    # w2_ref : (C, hidden)  conv2 weight (PyTorch weight is (C, hidden, 1, 1))
    # b2_ref : (C, 1)
    # o_ref  : (1, C, HW)
    x = x_ref[0]                                           # (C, HW), lane-dense

    # Global average pool over spatial (== AdaptiveAvgPool2d(1)): cross-lane reduce (XLU).
    m = jnp.mean(x, axis=1, keepdims=True)                 # (C, 1)

    # 1x1 conv (C -> hidden) + ReLU: broadcast-MAC + cross-sublane reduce.
    h = jnp.sum(w1t_ref[...] * m, axis=0, keepdims=True)   # (1, hidden)
    h = jnp.maximum(h + b1_ref[...], 0.0)

    # 1x1 conv (hidden -> C) + Sigmoid: broadcast-MAC + cross-lane reduce.
    g = jnp.sum(w2_ref[...] * h, axis=1, keepdims=True)    # (C, 1)
    g = 1.0 / (1.0 + jnp.exp(-(g + b2_ref[...])))          # sigmoid (EUP exp)

    # Channel-wise gate applied to the full tile; lane-dense (256-wide) store.
    o_ref[0] = (x * g).astype(o_ref.dtype)


def local_forward(x_nchw, w1, b1, w2, b2):
    """Local.forward.

    x_nchw: (N, C, H, W) float32
    w1: (hidden, C)  conv1 1x1 weight (squeezed from (hidden, C, 1, 1))
    b1: (hidden,)
    w2: (C, hidden)  conv2 1x1 weight (squeezed from (C, hidden, 1, 1))
    b2: (C,)
    returns (N, C, H, W)
    """
    N, C, H, W = x_nchw.shape
    hidden = w1.shape[0]
    HW = H * W

    # Pure reshapes (contiguous) — no transpose, no pad.
    x_flat = x_nchw.reshape(N, C, HW)
    w1t = w1.T.reshape(C, hidden)
    b1r = b1.reshape(1, hidden)
    w2r = w2.reshape(C, hidden)
    b2r = b2.reshape(C, 1)

    out = pl.pallas_call(
        _local_kernel,
        out_shape=jax.ShapeDtypeStruct((N, C, HW), jnp.float32),
        grid=(N,),
        in_specs=[
            pl.BlockSpec((1, C, HW), lambda n: (n, 0, 0)),
            pl.BlockSpec((C, hidden), lambda n: (0, 0)),
            pl.BlockSpec((1, hidden), lambda n: (0, 0)),
            pl.BlockSpec((C, hidden), lambda n: (0, 0)),
            pl.BlockSpec((C, 1), lambda n: (0, 0)),
        ],
        out_specs=pl.BlockSpec((1, C, HW), lambda n: (n, 0, 0)),
        compiler_params=pltpu.CompilerParams(
            dimension_semantics=("parallel",)),
    )(x_flat, w1t, b1r, w2r, b2r)

    return out.reshape(N, C, H, W)


def local_reference(x, w1, b1, w2, b2):
    """Pure-JAX reference matching the PyTorch Local module."""
    m = jnp.mean(x, axis=(2, 3))                       # (N, C)  == AdaptiveAvgPool2d(1)
    h = jnp.maximum(m @ w1.T + b1, 0.0)                # (N, hidden)
    g = jax.nn.sigmoid(h @ w2.T + b2)                  # (N, C)
    return x * g[:, :, None, None]


if __name__ == "__main__":
    # Module config: dim=4, growth_rate=2.0 -> hidden_dim = int(dim // growth_rate) = 2
    dim, growth_rate = 4, 2.0
    hidden_dim = int(dim // growth_rate)
    N, H, W = 2, 16, 16

    key = jax.random.PRNGKey(0)
    kx, k1, kb1, k2, kb2 = jax.random.split(key, 5)

    x = jax.random.normal(kx, (N, dim, H, W), dtype=jnp.float32)

    # Deterministic synthetic parameters (1x1 conv weights squeezed to 2-D).
    w1 = jax.random.normal(k1, (hidden_dim, dim), dtype=jnp.float32) * 0.5
    b1 = jax.random.normal(kb1, (hidden_dim,), dtype=jnp.float32) * 0.1
    w2 = jax.random.normal(k2, (dim, hidden_dim), dtype=jnp.float32) * 0.5
    b2 = jax.random.normal(kb2, (dim,), dtype=jnp.float32) * 0.1

    y = local_forward(x, w1, b1, w2, b2)
    jax.block_until_ready(y)

    y_ref = local_reference(x, w1, b1, w2, b2)
    assert y.shape == (N, dim, H, W)
    assert jnp.allclose(y, y_ref, atol=1e-5, rtol=1e-5), (
        float(jnp.max(jnp.abs(y - y_ref))))

    print("KERNEL_OK")
</pallas_src>

<mosaic_0001>
module attributes {stable_mosaic.version = 11 : i64} {
  func.func @_local_kernel(%arg0: i32, %arg1: memref<1x4x256xf32, #tpu.memory_space<vmem>>, %arg2: memref<4x2xf32, #tpu.memory_space<vmem>>, %arg3: memref<1x2xf32, #tpu.memory_space<vmem>>, %arg4: memref<4x2xf32, #tpu.memory_space<vmem>>, %arg5: memref<4x1xf32, #tpu.memory_space<vmem>>, %arg6: memref<1x4x256xf32, #tpu.memory_space<vmem>>) attributes {dimension_semantics = [#tpu.dimension_semantics<parallel>], iteration_bounds = array<i64: 2>, scalar_prefetch = 0 : i64, scratch_operands = 0 : i64, tpu.core_type = #tpu.core_type<tc>, window_params = [{transform_indices = @transform_0, window_bounds = array<i64: 1, 4, 256>}, {pipeline_mode = #tpu.pipeline_mode<synchronous>, transform_indices = @transform_1, window_bounds = array<i64: 4, 2>}, {pipeline_mode = #tpu.pipeline_mode<synchronous>, transform_indices = @transform_2, window_bounds = array<i64: 1, 2>}, {pipeline_mode = #tpu.pipeline_mode<synchronous>, transform_indices = @transform_3, window_bounds = array<i64: 4, 2>}, {pipeline_mode = #tpu.pipeline_mode<synchronous>, transform_indices = @transform_4, window_bounds = array<i64: 4, 1>}, {transform_indices = @transform_5, window_bounds = array<i64: 1, 4, 256>}]} {
    %c0 = arith.constant 0 : index
    %c0_0 = arith.constant 0 : index
    %c0_1 = arith.constant 0 : index
    %0 = vector.load %arg1[%c0, %c0_0, %c0_1] : memref<1x4x256xf32, #tpu.memory_space<vmem>>, vector<1x4x256xf32>
    %1 = vector.shape_cast %0 : vector<1x4x256xf32> to vector<4x256xf32>
    %cst = arith.constant dense<0.000000e+00> : vector<4xf32>
    %2 = vector.multi_reduction <add>, %1, %cst [1] : vector<4x256xf32> to vector<4xf32>
    %3 = vector.shape_cast %2 : vector<4xf32> to vector<4x1xf32>
    %cst_2 = arith.constant 2.560000e+02 : f32
    %4 = vector.broadcast %cst_2 : f32 to vector<4x1xf32>
    %5 = arith.divf %3, %4 : vector<4x1xf32>
    %c0_3 = arith.constant 0 : index
    %c0_4 = arith.constant 0 : index
    %6 = vector.load %arg2[%c0_3, %c0_4] : memref<4x2xf32, #tpu.memory_space<vmem>>, vector<4x2xf32>
    %7 = vector.broadcast %5 : vector<4x1xf32> to vector<4x2xf32>
    %8 = arith.mulf %6, %7 : vector<4x2xf32>
    %cst_5 = arith.constant dense<0.000000e+00> : vector<2xf32>
    %9 = vector.multi_reduction <add>, %8, %cst_5 [0] : vector<4x2xf32> to vector<2xf32>
    %10 = vector.shape_cast %9 : vector<2xf32> to vector<1x2xf32>
    %c0_6 = arith.constant 0 : index
    %c0_7 = arith.constant 0 : index
    %11 = vector.load %arg3[%c0_6, %c0_7] : memref<1x2xf32, #tpu.memory_space<vmem>>, vector<1x2xf32>
    %12 = arith.addf %10, %11 : vector<1x2xf32>
    %cst_8 = arith.constant 0.000000e+00 : f32
    %13 = vector.broadcast %cst_8 : f32 to vector<1x2xf32>
    %14 = arith.maximumf %12, %13 : vector<1x2xf32>
    %c0_9 = arith.constant 0 : index
    %c0_10 = arith.constant 0 : index
    %15 = vector.load %arg4[%c0_9, %c0_10] : memref<4x2xf32, #tpu.memory_space<vmem>>, vector<4x2xf32>
    %16 = vector.broadcast %14 : vector<1x2xf32> to vector<4x2xf32>
    %17 = arith.mulf %15, %16 : vector<4x2xf32>
    %cst_11 = arith.constant dense<0.000000e+00> : vector<4xf32>
    %18 = vector.multi_reduction <add>, %17, %cst_11 [1] : vector<4x2xf32> to vector<4xf32>
    %19 = vector.shape_cast %18 : vector<4xf32> to vector<4x1xf32>
    %c0_12 = arith.constant 0 : index
    %c0_13 = arith.constant 0 : index
    %20 = vector.load %arg5[%c0_12, %c0_13] : memref<4x1xf32, #tpu.memory_space<vmem>>, vector<4x1xf32>
    %21 = arith.addf %19, %20 : vector<4x1xf32>
    %cst_14 = arith.constant 0.000000e+00 : f32
    %22 = vector.broadcast %cst_14 : f32 to vector<4x1xf32>
    %23 = arith.subf %22, %21 : vector<4x1xf32>
    %24 = math.exp %23 : vector<4x1xf32>
    %cst_15 = arith.constant 1.000000e+00 : f32
    %25 = vector.broadcast %cst_15 : f32 to vector<4x1xf32>
    %26 = arith.addf %25, %24 : vector<4x1xf32>
    %cst_16 = arith.constant 1.000000e+00 : f32
    %27 = vector.broadcast %cst_16 : f32 to vector<4x1xf32>
    %28 = arith.divf %27, %26 : vector<4x1xf32>
    %29 = vector.broadcast %28 : vector<4x1xf32> to vector<4x256xf32>
    %30 = arith.mulf %1, %29 : vector<4x256xf32>
    %c0_17 = arith.constant 0 : index
    %c0_18 = arith.constant 0 : index
    %c0_19 = arith.constant 0 : index
    %31 = vector.load %arg6[%c0_17, %c0_18, %c0_19] : memref<1x4x256xf32, #tpu.memory_space<vmem>>, vector<1x4x256xf32>
    %32 = vector.shape_cast %31 : vector<1x4x256xf32> to vector<4x256xf32>
    %33 = vector.shape_cast %30 : vector<4x256xf32> to vector<1x4x256xf32>
    tpu.vector_store %arg6[%c0_17, %c0_18, %c0_19], %33 {strides = array<i32>} : memref<1x4x256xf32, #tpu.memory_space<vmem>>, vector<1x4x256xf32>,
    return
  }
  func.func @transform_0(%arg0: i32) -> (i32, i32, i32) {
    %c0_i32 = arith.constant 0 : i32
    %c0_i32_0 = arith.constant 0 : i32
    %c0_i32_1 = arith.constant 0 : i32
    return %arg0, %c0_i32, %c0_i32_0 : i32, i32, i32
  }
  func.func @transform_1(%arg0: i32) -> (i32, i32) {
    %c0_i32 = arith.constant 0 : i32
    %c0_i32_0 = arith.constant 0 : i32
    %c0_i32_1 = arith.constant 0 : i32
    return %c0_i32, %c0_i32_0 : i32, i32
  }
  func.func @transform_2(%arg0: i32) -> (i32, i32) {
    %c0_i32 = arith.constant 0 : i32
    %c0_i32_0 = arith.constant 0 : i32
    %c0_i32_1 = arith.constant 0 : i32
    return %c0_i32, %c0_i32_0 : i32, i32
  }
  func.func @transform_3(%arg0: i32) -> (i32, i32) {
    %c0_i32 = arith.constant 0 : i32
    %c0_i32_0 = arith.constant 0 : i32
    %c0_i32_1 = arith.constant 0 : i32
    return %c0_i32, %c0_i32_0 : i32, i32
  }
  func.func @transform_4(%arg0: i32) -> (i32, i32) {
    %c0_i32 = arith.constant 0 : i32
    %c0_i32_0 = arith.constant 0 : i32
    %c0_i32_1 = arith.constant 0 : i32
    return %c0_i32, %c0_i32_0 : i32, i32
  }
  func.func @transform_5(%arg0: i32) -> (i32, i32, i32) {
    %c0_i32 = arith.constant 0 : i32
    %c0_i32_0 = arith.constant 0 : i32
    %c0_i32_1 = arith.constant 0 : i32
    return %arg0, %c0_i32, %c0_i32_0 : i32, i32, i32
  }
}

</mosaic_0001>

<llo_original>
// kernel: tpu_custom_call.1
$region0: #{tpu_custom_call.1}
  #allocation0 [shape = 'u32[]', space=smem, size = 0x4, offset = 0x4, fixed_abs, tag = 'smem constant byte address 0x4 - core index']
  #allocation1 [shape = 'u32[144,128]{1,0:T(1,128)}', space=vmem, size = 0x12000, scoped, tag = 'internal scratch']
  %s0 = inlined_call_operand.vmem [shape: f32[2,4,256], index: 0, kind: input, shape index: {}]
  %s1 = inlined_call_operand.vmem [shape: f32[4,2], index: 1, kind: input, shape index: {}]
  %s2 = inlined_call_operand.vmem [shape: f32[1,2], index: 2, kind: input, shape index: {}]
  %s3 = inlined_call_operand.vmem [shape: f32[4,2], index: 3, kind: input, shape index: {}]
  %s4 = inlined_call_operand.vmem [shape: f32[4,1], index: 4, kind: input, shape index: {}]
  %s5 = inlined_call_operand.hbm [shape: f32[2,4,256], index: 5, kind: output, shape index: {}]
  %s6 = sld [smem:[#allocation0]]
  $region53: #{tpu_custom_call.1} parent=0
    _
  %s8 = ssub.s32 1, %s6
  %s9 = scalar_select 0, %s8, %s6
  $region1: #{tpu_custom_call.1} parent=0
    #allocation2 [shape = 'u8[8192]{0}', space=vmem, size = 0x2000, scoped, tag = 'output window, operand 0']
    #allocation3 [shape = 's32[2]{0}', space=sflag, size = 0x8, scoped, tag = 'scoped memory for tpu_custom_call.1']
    %10 = vsyncpa [#allocation3], 0
    %s11 = scalar_lea.sflag [#allocation3], 1
    %12 = vsyncpa %s11, 0
    loop: start=0, step=1, limit=4
    $region2: #{tpu_custom_call.1} parent=1 // loop_pre_header
      _
    $region3: #{tpu_custom_call.1} parent=1 // loop_header
      %s14 = sphi 0, %s18
      %p15 = scmp.ge.s32.totalorder %s14, 4
      %s24 = sphi 0, %s26
      %s27 = sphi 0, %s24
      %s28 = sphi 0, %s27
      %s44 = sphi 0, %s28
      %s48 = sphi 0, %s48
      %s50 = sphi 0, %s48
      %s51 = sphi 0, %s50
      %s65 = sphi 0, %s51
      %s69 = sphi 0, %s69
      %s71 = sphi 0, %s69
      %s72 = sphi 0, %s71
      %s86 = sphi 0, %s72
      %s90 = sphi 0, %s90
      %s92 = sphi 0, %s90
      %s93 = sphi 0, %s92
      %s107 = sphi 0, %s93
      %s111 = sphi 0, %s111
      %s113 = sphi 0, %s111
      %s114 = sphi 0, %s113
      %s128 = sphi 0, %s114
      %s134 = sphi 0, %s136
      %s137 = sphi 0, %s134
      %s138 = sphi 0, %s137
      %s154 = sphi 0, %s138
    $region4: #{tpu_custom_call.1} parent=1 // loop_header_branch
      %17 = sbr.rel (%p15) target = $region8
    $region5: #{tpu_custom_call.1} parent=1 // loop_body
      %s19 = ssub.s32 %s14, 1
      %s20 = ssub.s32 %s14, 2
      %s21 = sadd.s32 %s14, 1
      %s22 = ssub.s32 %s14, %s21
      %p23 = scmp.eq.s32.totalorder %s22, 0
      %s25 = sadd.s32 %s24, 1
      %s26 = scalar_select %p23, %s24, %s25
      %p29 = pneg %p23
      %p30 = scmp.eq.s32.totalorder %s14, 1
      %p31 = por %p29, %p30
      %p32 = scmp.ne.s32.totalorder %s24, %s27
      %p33 = scmp.eq.s32.totalorder %s14, 0
      %p34 = por %p32, %p33
      %p35 = scmp.ne.s32.totalorder %s24, %s27
      %p36 = scmp.eq.s32.totalorder %s19, 1
      %p37 = por %p35, %p36
      %p38 = scmp.ne.s32.totalorder %s27, %s28
      %p39 = scmp.eq.s32.totalorder %s19, 0
      %p40 = por %p38, %p39
      %p41 = scmp.ne.s32.totalorder %s27, %s28
      %p42 = scmp.eq.s32.totalorder %s20, 1
      %p43 = por %p41, %p42
      %p45 = scmp.ne.s32.totalorder %s28, %s44
      %p46 = scmp.eq.s32.totalorder %s20, 0
      %p47 = por %p45, %p46
      %s49 = sadd.s32 %s48, 1
      %p52 = scmp.eq.s32.totalorder %s14, 1
      %p53 = scmp.ne.s32.totalorder %s48, %s50
      %p54 = scmp.eq.s32.totalorder %s14, 0
      %p55 = por %p53, %p54
      %p56 = scmp.ne.s32.totalorder %s48, %s50
      %p57 = scmp.eq.s32.totalorder %s19, 1
      %p58 = por %p56, %p57
      %p59 = scmp.ne.s32.totalorder %s50, %s51
      %p60 = scmp.eq.s32.totalorder %s19, 0
      %p61 = por %p59, %p60
      %p62 = scmp.ne.s32.totalorder %s50, %s51
      %p63 = scmp.eq.s32.totalorder %s20, 1
      %p64 = por %p62, %p63
      %p66 = scmp.ne.s32.totalorder %s51, %s65
      %p67 = scmp.eq.s32.totalorder %s20, 0
      %p68 = por %p66, %p67
      %s70 = sadd.s32 %s69, 1
      %p73 = scmp.eq.s32.totalorder %s14, 1
      %p74 = scmp.ne.s32.totalorder %s69, %s71
      %p75 = scmp.eq.s32.totalorder %s14, 0
      %p76 = por %p74, %p75
      %p77 = scmp.ne.s32.totalorder %s69, %s71
      %p78 = scmp.eq.s32.totalorder %s19, 1
      %p79 = por %p77, %p78
      %p80 = scmp.ne.s32.totalorder %s71, %s72
      %p81 = scmp.eq.s32.totalorder %s19, 0
      %p82 = por %p80, %p81
      %p83 = scmp.ne.s32.totalorder %s71, %s72
      %p84 = scmp.eq.s32.totalorder %s20, 1
      %p85 = por %p83, %p84
      %p87 = scmp.ne.s32.totalorder %s72, %s86
      %p88 = scmp.eq.s32.totalorder %s20, 0
      %p89 = por %p87, %p88
      %s91 = sadd.s32 %s90, 1
      %p94 = scmp.eq.s32.totalorder %s14, 1
      %p95 = scmp.ne.s32.totalorder %s90, %s92
      %p96 = scmp.eq.s32.totalorder %s14, 0
      %p97 = por %p95, %p96
      %p98 = scmp.ne.s32.totalorder %s90, %s92
      %p99 = scmp.eq.s32.totalorder %s19, 1
      %p100 = por %p98, %p99
      %p101 = scmp.ne.s32.totalorder %s92, %s93
      %p102 = scmp.eq.s32.totalorder %s19, 0
      %p103 = por %p101, %p102
      %p104 = scmp.ne.s32.totalorder %s92, %s93
      %p105 = scmp.eq.s32.totalorder %s20, 1
      %p106 = por %p104, %p105
      %p108 = scmp.ne.s32.totalorder %s93, %s107
      %p109 = scmp.eq.s32.totalorder %s20, 0
      %p110 = por %p108, %p109
      %s112 = sadd.s32 %s111, 1
      %p115 = scmp.eq.s32.totalorder %s14, 1
      %p116 = scmp.ne.s32.totalorder %s111, %s113
      %p117 = scmp.eq.s32.totalorder %s14, 0
      %p118 = por %p116, %p117
      %p119 = scmp.ne.s32.totalorder %s111, %s113
      %p120 = scmp.eq.s32.totalorder %s19, 1
      %p121 = por %p119, %p120
      %p122 = scmp.ne.s32.totalorder %s113, %s114
      %p123 = scmp.eq.s32.totalorder %s19, 0
      %p124 = por %p122, %p123
      %p125 = scmp.ne.s32.totalorder %s113, %s114
      %p126 = scmp.eq.s32.totalorder %s20, 1
      %p127 = por %p125, %p126
      %p129 = scmp.ne.s32.totalorder %s114, %s128
      %p130 = scmp.eq.s32.totalorder %s20, 0
      %p131 = por %p129, %p130
      %s132 = ssub.s32 %s14, %s21
      %p133 = scmp.eq.s32.totalorder %s132, 0
      %s135 = sadd.s32 %s134, 1
      %s136 = scalar_select %p133, %s134, %s135
      %p139 = pneg %p133
      %p140 = scmp.eq.s32.totalorder %s14, 1
      %p141 = por %p139, %p140
      %p142 = scmp.ne.s32.totalorder %s134, %s137
      %p143 = scmp.eq.s32.totalorder %s14, 0
      %p144 = por %p142, %p143
      %p145 = scmp.ne.s32.totalorder %s134, %s137
      %p146 = scmp.eq.s32.totalorder %s19, 1
      %p147 = por %p145, %p146
      %p148 = scmp.ne.s32.totalorder %s137, %s138
      %p149 = scmp.eq.s32.totalorder %s19, 0
      %p150 = por %p148, %p149
      %p151 = scmp.ne.s32.totalorder %s137, %s138
      %p152 = scmp.eq.s32.totalorder %s20, 1
      %p153 = por %p151, %p152
      %p155 = scmp.ne.s32.totalorder %s138, %s154
      %p156 = scmp.eq.s32.totalorder %s20, 0
      %p157 = por %p155, %p156
      %p158 = scmp.le.s32.totalorder 1, %s14
      %p159 = scmp.lt.s32.totalorder %s14, 3
      %p160 = pnand %p158, %p159
      %p161 = pneg %p160
      // Predicated region
      $region9: #{tpu_custom_call.1} parent=5 // pred_check
        _
      $region10: #{tpu_custom_call.1} parent=5 // pred_check_branch
        %163 = sbr.rel (%p160) target = $region12
      $region11: #{tpu_custom_call.1} parent=5 // pred_region
        %s164 = ssub.s32 %s14, 1
        // Predicated region
        $region13: #{tpu_custom_call.1} parent=11 // pred_check
          %p165 = pneg %p61
        $region14: #{tpu_custom_call.1} parent=11 // pred_check_branch
          %167 = sbr.rel (%p165) target = $region16
        $region15: #{tpu_custom_call.1} parent=11 // pred_region
          _
        $region16: #{tpu_custom_call.1} parent=11 // pred_fallthru
          _
        // Predicated region
        $region17: #{tpu_custom_call.1} parent=11 // pred_check
          %p168 = pneg %p82
        $region18: #{tpu_custom_call.1} parent=11 // pred_check_branch
          %170 = sbr.rel (%p168) target = $region20
        $region19: #{tpu_custom_call.1} parent=11 // pred_region
          _
        $region20: #{tpu_custom_call.1} parent=11 // pred_fallthru
          _
        // Predicated region
        $region21: #{tpu_custom_call.1} parent=11 // pred_check
          %p171 = pneg %p103
        $region22: #{tpu_custom_call.1} parent=11 // pred_check_branch
          %173 = sbr.rel (%p171) target = $region24
        $region23: #{tpu_custom_call.1} parent=11 // pred_region
          _
        $region24: #{tpu_custom_call.1} parent=11 // pred_fallthru
          _
        // Predicated region
        $region25: #{tpu_custom_call.1} parent=11 // pred_check
          %p174 = pneg %p124
        $region26: #{tpu_custom_call.1} parent=11 // pred_check_branch
          %176 = sbr.rel (%p174) target = $region28
        $region27: #{tpu_custom_call.1} parent=11 // pred_region
          _
        $region28: #{tpu_custom_call.1} parent=11 // pred_fallthru
          _
      $region12: #{tpu_custom_call.1} parent=5 // pred_fallthru
        _
      %p177 = scmp.lt.s32.totalorder %s14, 2
      // Predicated region
      $region29: #{tpu_custom_call.1} parent=5 // pred_check
        %p178 = pneg %p177
      $region30: #{tpu_custom_call.1} parent=5 // pred_check_branch
        %180 = sbr.rel (%p178) target = $region32
      $region31: #{tpu_custom_call.1} parent=5 // pred_region
        // Predicated region
        $region33: #{tpu_custom_call.1} parent=31 // pred_check
          %p181 = pneg %p34
        $region34: #{tpu_custom_call.1} parent=31 // pred_check_branch
          %183 = sbr.rel (%p181) target = $region36
        $region35: #{tpu_custom_call.1} parent=31 // pred_region
          %p184 = scmp.lt.s32.totalorder %s14, 1
          %s185 = scalar_select %p184, %s14, 1
          %s186 = smul.addr %s185, 2
          %s187 = smul.addr %s186, 4
          %s188 = scalar_lea.vmem %s0, %s187
        $region36: #{tpu_custom_call.1} parent=31 // pred_fallthru
          _
      $region32: #{tpu_custom_call.1} parent=5 // pred_fallthru
        _
      %p189 = scmp.le.s32.totalorder 1, %s14
      %p190 = scmp.lt.s32.totalorder %s14, 3
      %p191 = pnand %p189, %p190
      %p192 = pneg %p191
      // Predicated region
      $region37: #{tpu_custom_call.1} parent=5 // pred_check
        _
      $region38: #{tpu_custom_call.1} parent=5 // pred_check_branch
        %194 = sbr.rel (%p191) target = $region40
      $region39: #{tpu_custom_call.1} parent=5 // pred_region
        %s195 = ssub.s32 %s14, 1
        %p196 = scmp.lt.s32.totalorder %s19, 1
        %s197 = scalar_select %p196, %s19, 1
        %s198 = smul.addr %s197, 2
        %s199 = smul.addr %s198, 4
        %s200 = scalar_lea.vmem %s0, %s199
        %p201 = pneg %p40
        %p202 = pneg %p37
        %p203 = pneg %p61
        %p204 = pneg %p58
        %p205 = pneg %p82
        %p206 = pneg %p79
        %p207 = pneg %p103
        %p208 = pneg %p100
        %p209 = pneg %p124
        %p210 = pneg %p121
        %p211 = pneg %p150
        %p212 = pneg %p147
        %s213 = sand.u32 %s137, 1
        %s214 = scalar_lea.sflag [#allocation3], %s213
        %s215 = sand.u32 %s137, 1
        %s216 = smul.addr %s215, 8
        %s217 = scalar_lea.vmem [#allocation2], %s216
        %p218 = scmp.lt.s32.totalorder %s19, 1
        %s219 = scalar_select %p218, %s19, 1
        %s220 = smul.addr %s219, 2
        %s221 = smul.addr %s220, 4
        %s222 = scalar_lea.vmem %s0, %s221
        %v223 = vld [vmem:[%s222] sm:$0xff]
        %v225 = vcombine.high %v223, %v223
        %vm227 = vcmask 1043456
        %v228 = vsel %vm227, %v223, 0.0
        %v229 = vsel %vm227, %v225, 0.0
        %v230 = vadd.f32 %v228, %v229
        %231 = vadd.xlane.f32.xlu0 %v230
        %v232 = vpop.xlane.xlu0 %231
        %v233 = vrcp.pop 256.0
        %v234 = vmul.f32 %v232, %v233
        %v235 = vld [vmem:[%s1] sm:$0xf]
        %v236 = vmul.f32 %v235, %v234
        %vm237 = vcmask 11264
        %v238 = vsel %vm237, %v236, 0.0
        %v239 = vrot.slane %v238, 4
        %v240 = vadd.f32 %v238, %v239
        %v241 = vrot.slane %v240, 2
        %v242 = vadd.f32 %v240, %v241
        %v243 = vrot.slane %v242, 1
        %v244 = vadd.f32 %v242, %v243
        %v245 = vld [vmem:[%s2] sm:$0x1]
        %v246 = vadd.f32 %v244, %v245
        %v247 = vmax.f32 %v246, 0.0
        %v248 = vld [vmem:[%s3] sm:$0xf]
        %v249 = vlaneseq
        %v250 = vshrl.u32 %v249, 7
        %v251 = vsub.s32 0, %v250
        %v252 = vrot.slane %v247, %v251
        %v253 = vmul.f32 %v248, %v252
        %v254 = vsel %vm237, %v253, 0.0
        %255 = vadd.xlane.f32.xlu0 %v254
        %v256 = vpop.xlane.xlu0 %255
        %v257 = vld [vmem:[%s4] sm:$0xf]
        %v258 = vadd.f32 %v256, %v257
        %v259 = vsub.f32 0.0, %v258
        %v260 = vmul.f32 %v259, 1.442695
        %v261 = vpow.pop %v260
        %v262 = vadd.f32 %v261, 1.0
        %v263 = vrcp.pop %v262
        %v264 = vmul.f32 1.0, %v263
        %266 = vset.pattern.permute.xlu0 0
        %267 = vperm.xlu0 %266, %v264
        %v268 = vpop.permute.xlu0 %267
        %v270 = vunpack.c.l.s4 839922192
        %v271 = vunpack.c.0.s8 %v270
        %v272 = vlaneseq
        %v273 = vshrl.u32 %v272, 7
        %v274 = vsub.s32 %v271, %v273
        %v275 = vrot.slane %v268, %v274
        %v277 = vmul.f32 %v223, %v275
        %278 = vst [vmem:[%s217] sm:$0xff] %v277
        %s279 = sand.u32 %s137, 1
        %s280 = scalar_lea.sflag [#allocation3], %s279
        %s281 = sand.u32 %s137, 1
        %s282 = smul.addr %s281, 8
        %s283 = scalar_lea.vmem [#allocation2], %s282
        // Predicated region
        $region41: #{tpu_custom_call.1} parent=39 // pred_check
          %p284 = pneg %p147
        $region42: #{tpu_custom_call.1} parent=39 // pred_check_branch
          %286 = sbr.rel (%p284) target = $region44
        $region43: #{tpu_custom_call.1} parent=39 // pred_region
          %s288 = ssub.s32 128, 128
          %289 = vsyncadd %s280, %s288
          %s290 = smul.addr %s19, 2
          %s291 = smul.addr %s290, 64
          %s292 = scalar_lea.hbm %s5, %s291
          %s294 = sshll.u32 %s283, 4
          %s295 = int_to_ptr.vmem [resolvable:$true] %s294
          %297 = dma.vmem_to_hbm [thread:$0]  %s295, 128, %s292, %s280
        $region44: #{tpu_custom_call.1} parent=39 // pred_fallthru
          _
      $region40: #{tpu_custom_call.1} parent=5 // pred_fallthru
        _
      %p298 = scmp.le.s32.totalorder 2, %s14
      // Predicated region
      $region45: #{tpu_custom_call.1} parent=5 // pred_check
        %p299 = pneg %p298
      $region46: #{tpu_custom_call.1} parent=5 // pred_check_branch
        %301 = sbr.rel (%p299) target = $region48
      $region47: #{tpu_custom_call.1} parent=5 // pred_region
        %s302 = ssub.s32 %s14, 2
        // Predicated region
        $region49: #{tpu_custom_call.1} parent=47 // pred_check
          %p303 = pneg %p153
        $region50: #{tpu_custom_call.1} parent=47 // pred_check_branch
          %305 = sbr.rel (%p303) target = $region52
        $region51: #{tpu_custom_call.1} parent=47 // pred_region
          %s306 = sand.u32 %s138, 1
          %s307 = scalar_lea.sflag [#allocation3], %s306
          %s308 = sand.u32 %s138, 1
          %s309 = smul.addr %s308, 8
          %s310 = scalar_lea.vmem [#allocation2], %s309
          %311 = dma.done %s307, 128
        $region52: #{tpu_custom_call.1} parent=47 // pred_fallthru
          _
      $region48: #{tpu_custom_call.1} parent=5 // pred_fallthru
        _
    $region6: #{tpu_custom_call.1} parent=1 // loop_footer
      %s18 = sadd.s32 1, %s14
    $region7: #{tpu_custom_call.1} parent=1 // loop_footer_branch
      %13 = sbr.rel target = $region3
    $region8: #{tpu_custom_call.1} parent=1 // loop_exit
      _
    %312 = vsyncpa [#allocation3], 1
    %s313 = scalar_lea.sflag [#allocation3], 1
    %314 = vsyncpa %s313, 1

</llo_original>
